<compile_context>
chip_gen: v5e
topology: v5e:2x2
jax: 0.10.0
libtpu: 0.0.40
codegen_flags: <defaults>
</compile_context>

<pallas_src>
import functools

import jax
import jax.numpy as jnp
from jax.experimental import pallas as pl
from jax.experimental.pallas import tpu as pltpu

LEAKY_SLOPE = 0.01  # PyTorch nn.LeakyReLU default negative_slope


def _mlp_kernel(x_ref, *refs, num_layers: int):
    """Fused MLP on one batch tile.

    refs = (w0, b0, w1, b1, ..., w_{L-1}, b_{L-1}, o_ref)
      x_ref : (tm, in)          w_i : (k_in, k_out)   b_i : (1, k_out)
      o_ref : (tm, latent)
    All intermediates are kept as values (vregs) — no HBM traffic between
    layers.
    """
    o_ref = refs[-1]
    wb = refs[:-1]

    h = x_ref[...].astype(jnp.float32)
    for i in range(num_layers):
        w = wb[2 * i][...]
        b = wb[2 * i + 1][...]
        h = jnp.dot(h, w, preferred_element_type=jnp.float32) + b
        if i < num_layers - 1:                     # LeakyReLU after all but last
            h = jnp.where(h >= 0, h, LEAKY_SLOPE * h)
    o_ref[...] = h.astype(o_ref.dtype)


def encoder_forward(params, x, *, block_m: int = 256):
    """Fused forward pass.  `params` is a list of (w, b) with w stored
    (in_features, out_features) — so the kernel computes x @ w + b directly,
    no transpose in the hot path."""
    M, K_in = x.shape
    num_layers = len(params)
    N_out = params[-1][0].shape[1]

    # Batch tile: full batch if small, otherwise a sublane-aligned tile.
    if M <= block_m:
        tm = M
    else:
        tm = block_m - (block_m % 8) if block_m % 8 else block_m
    grid_m = pl.cdiv(M, tm)

    flat_args = []
    in_specs = [pl.BlockSpec((tm, K_in), lambda i: (i, 0))]
    for (w, b) in params:
        k_in, k_out = w.shape
        flat_args.append(w)
        flat_args.append(b.reshape(1, k_out))
        # Full-array weight/bias blocks, resident in VMEM for every grid step.
        in_specs.append(pl.BlockSpec((k_in, k_out), lambda i: (0, 0)))
        in_specs.append(pl.BlockSpec((1, k_out), lambda i: (0, 0)))

    itemsize = jnp.dtype(x.dtype).itemsize
    flops = sum(2 * M * w.shape[0] * w.shape[1] for w, _ in params)
    bytes_accessed = itemsize * (
        x.size + sum(w.size + b.size for w, b in params) + M * N_out)

    kernel = functools.partial(_mlp_kernel, num_layers=num_layers)
    return pl.pallas_call(
        kernel,
        out_shape=jax.ShapeDtypeStruct((M, N_out), x.dtype),
        grid=(grid_m,),
        in_specs=in_specs,
        out_specs=pl.BlockSpec((tm, N_out), lambda i: (i, 0)),
        compiler_params=pltpu.CompilerParams(
            dimension_semantics=("parallel",)),
        cost_estimate=pl.CostEstimate(
            flops=flops, transcendentals=0, bytes_accessed=bytes_accessed),
    )(x, *flat_args)


def init_encoder_params(key, in_channels, hidden_channels, latent_channels,
                        num_layers, dtype=jnp.float32):
    """nn.Linear-style init (uniform +-1/sqrt(fan_in)), but weights are stored
    (in_features, out_features) so the forward pass never transposes."""
    dims = ([in_channels] + [hidden_channels] * (num_layers - 1)
            + [latent_channels])
    params = []
    for i in range(len(dims) - 1):
        fan_in, fan_out = dims[i], dims[i + 1]
        key, kw, kb = jax.random.split(key, 3)
        bound = 1.0 / jnp.sqrt(jnp.asarray(fan_in, dtype))
        w = jax.random.uniform(kw, (fan_in, fan_out), dtype,
                               minval=-bound, maxval=bound)
        b = jax.random.uniform(kb, (fan_out,), dtype,
                               minval=-bound, maxval=bound)
        params.append((w, b))
    return params


def encoder_reference(params, x):
    """Pure-JAX reference for correctness checks."""
    n = len(params)
    for i, (w, b) in enumerate(params):
        x = x @ w + b
        if i < n - 1:
            x = jnp.where(x >= 0, x, LEAKY_SLOPE * x)
    return x


if __name__ == "__main__":
    in_channels = 16
    hidden_channels = 32
    latent_channels = 8
    num_layers = 4
    batch = 8

    key = jax.random.PRNGKey(0)
    key, kx = jax.random.split(key)
    x = jax.random.normal(kx, (batch, in_channels), jnp.float32)

    params = init_encoder_params(key, in_channels, hidden_channels,
                                 latent_channels, num_layers)

    # Small batch: single full-extent block, one fused kernel invocation.
    out = encoder_forward(params, x)
    out = jax.block_until_ready(out)
    ref = encoder_reference(params, x)
    assert out.shape == (batch, latent_channels)
    assert jnp.allclose(out, ref, atol=1e-5, rtol=1e-5), "mismatch vs reference"

    # Larger batch: exercises the tiled-M ("parallel") path.
    key, kx2 = jax.random.split(key)
    x_big = jax.random.normal(kx2, (64, in_channels), jnp.float32)
    out_big = jax.block_until_ready(
        encoder_forward(params, x_big, block_m=32))
    ref_big = encoder_reference(params, x_big)
    assert jnp.allclose(out_big, ref_big, atol=1e-5, rtol=1e-5), \
        "mismatch vs reference (tiled)"

    print("KERNEL_OK")
</pallas_src>

<mosaic_0001>
module attributes {stable_mosaic.version = 11 : i64} {
  func.func @_mlp_kernel(%arg0: i32, %arg1: memref<8x16xf32, #tpu.memory_space<vmem>>, %arg2: memref<16x32xf32, #tpu.memory_space<vmem>>, %arg3: memref<1x32xf32, #tpu.memory_space<vmem>>, %arg4: memref<32x32xf32, #tpu.memory_space<vmem>>, %arg5: memref<1x32xf32, #tpu.memory_space<vmem>>, %arg6: memref<32x32xf32, #tpu.memory_space<vmem>>, %arg7: memref<1x32xf32, #tpu.memory_space<vmem>>, %arg8: memref<32x8xf32, #tpu.memory_space<vmem>>, %arg9: memref<1x8xf32, #tpu.memory_space<vmem>>, %arg10: memref<8x8xf32, #tpu.memory_space<vmem>>) attributes {dimension_semantics = [#tpu.dimension_semantics<parallel>], iteration_bounds = array<i64: 1>, scalar_prefetch = 0 : i64, scratch_operands = 0 : i64, tpu.core_type = #tpu.core_type<tc>, window_params = [{transform_indices = @transform_0, window_bounds = array<i64: 8, 16>}, {pipeline_mode = #tpu.pipeline_mode<synchronous>, transform_indices = @transform_1, window_bounds = array<i64: 16, 32>}, {pipeline_mode = #tpu.pipeline_mode<synchronous>, transform_indices = @transform_2, window_bounds = array<i64: 1, 32>}, {pipeline_mode = #tpu.pipeline_mode<synchronous>, transform_indices = @transform_3, window_bounds = array<i64: 32, 32>}, {pipeline_mode = #tpu.pipeline_mode<synchronous>, transform_indices = @transform_4, window_bounds = array<i64: 1, 32>}, {pipeline_mode = #tpu.pipeline_mode<synchronous>, transform_indices = @transform_5, window_bounds = array<i64: 32, 32>}, {pipeline_mode = #tpu.pipeline_mode<synchronous>, transform_indices = @transform_6, window_bounds = array<i64: 1, 32>}, {pipeline_mode = #tpu.pipeline_mode<synchronous>, transform_indices = @transform_7, window_bounds = array<i64: 32, 8>}, {pipeline_mode = #tpu.pipeline_mode<synchronous>, transform_indices = @transform_8, window_bounds = array<i64: 1, 8>}, {transform_indices = @transform_9, window_bounds = array<i64: 8, 8>}]} {
    %c0 = arith.constant 0 : index
    %c0_0 = arith.constant 0 : index
    %0 = vector.load %arg1[%c0, %c0_0] : memref<8x16xf32, #tpu.memory_space<vmem>>, vector<8x16xf32>
    %c0_1 = arith.constant 0 : index
    %c0_2 = arith.constant 0 : index
    %1 = vector.load %arg2[%c0_1, %c0_2] : memref<16x32xf32, #tpu.memory_space<vmem>>, vector<16x32xf32>
    %c0_3 = arith.constant 0 : index
    %c0_4 = arith.constant 0 : index
    %2 = vector.load %arg3[%c0_3, %c0_4] : memref<1x32xf32, #tpu.memory_space<vmem>>, vector<1x32xf32>
    %cst = arith.constant dense<0.000000e+00> : vector<8x32xf32>
    %3 = tpu.matmul %0, %1, %cst {dimension_numbers = #tpu.dot_dimension_numbers<[1], [0], [0], [1], [0, 0, 1, 1], [], []>} : vector<8x16xf32>, vector<16x32xf32>, vector<8x32xf32> -> vector<8x32xf32>
    %4 = vector.broadcast %2 : vector<1x32xf32> to vector<8x32xf32>
    %5 = arith.addf %3, %4 : vector<8x32xf32>
    %cst_5 = arith.constant 0.000000e+00 : f32
    %6 = vector.broadcast %cst_5 : f32 to vector<8x32xf32>
    %7 = arith.cmpf oge, %5, %6 : vector<8x32xf32>
    %cst_6 = arith.constant 0.00999999977 : f32
    %8 = vector.broadcast %cst_6 : f32 to vector<8x32xf32>
    %9 = arith.mulf %8, %5 : vector<8x32xf32>
    %10 = arith.select %7, %5, %9 : vector<8x32xi1>, vector<8x32xf32>
    %c0_7 = arith.constant 0 : index
    %c0_8 = arith.constant 0 : index
    %11 = vector.load %arg4[%c0_7, %c0_8] : memref<32x32xf32, #tpu.memory_space<vmem>>, vector<32x32xf32>
    %c0_9 = arith.constant 0 : index
    %c0_10 = arith.constant 0 : index
    %12 = vector.load %arg5[%c0_9, %c0_10] : memref<1x32xf32, #tpu.memory_space<vmem>>, vector<1x32xf32>
    %cst_11 = arith.constant dense<0.000000e+00> : vector<8x32xf32>
    %13 = tpu.matmul %10, %11, %cst_11 {dimension_numbers = #tpu.dot_dimension_numbers<[1], [0], [0], [1], [0, 0, 1, 1], [], []>} : vector<8x32xf32>, vector<32x32xf32>, vector<8x32xf32> -> vector<8x32xf32>
    %14 = vector.broadcast %12 : vector<1x32xf32> to vector<8x32xf32>
    %15 = arith.addf %13, %14 : vector<8x32xf32>
    %cst_12 = arith.constant 0.000000e+00 : f32
    %16 = vector.broadcast %cst_12 : f32 to vector<8x32xf32>
    %17 = arith.cmpf oge, %15, %16 : vector<8x32xf32>
    %cst_13 = arith.constant 0.00999999977 : f32
    %18 = vector.broadcast %cst_13 : f32 to vector<8x32xf32>
    %19 = arith.mulf %18, %15 : vector<8x32xf32>
    %20 = arith.select %17, %15, %19 : vector<8x32xi1>, vector<8x32xf32>
    %c0_14 = arith.constant 0 : index
    %c0_15 = arith.constant 0 : index
    %21 = vector.load %arg6[%c0_14, %c0_15] : memref<32x32xf32, #tpu.memory_space<vmem>>, vector<32x32xf32>
    %c0_16 = arith.constant 0 : index
    %c0_17 = arith.constant 0 : index
    %22 = vector.load %arg7[%c0_16, %c0_17] : memref<1x32xf32, #tpu.memory_space<vmem>>, vector<1x32xf32>
    %cst_18 = arith.constant dense<0.000000e+00> : vector<8x32xf32>
    %23 = tpu.matmul %20, %21, %cst_18 {dimension_numbers = #tpu.dot_dimension_numbers<[1], [0], [0], [1], [0, 0, 1, 1], [], []>} : vector<8x32xf32>, vector<32x32xf32>, vector<8x32xf32> -> vector<8x32xf32>
    %24 = vector.broadcast %22 : vector<1x32xf32> to vector<8x32xf32>
    %25 = arith.addf %23, %24 : vector<8x32xf32>
    %cst_19 = arith.constant 0.000000e+00 : f32
    %26 = vector.broadcast %cst_19 : f32 to vector<8x32xf32>
    %27 = arith.cmpf oge, %25, %26 : vector<8x32xf32>
    %cst_20 = arith.constant 0.00999999977 : f32
    %28 = vector.broadcast %cst_20 : f32 to vector<8x32xf32>
    %29 = arith.mulf %28, %25 : vector<8x32xf32>
    %30 = arith.select %27, %25, %29 : vector<8x32xi1>, vector<8x32xf32>
    %c0_21 = arith.constant 0 : index
    %c0_22 = arith.constant 0 : index
    %31 = vector.load %arg8[%c0_21, %c0_22] : memref<32x8xf32, #tpu.memory_space<vmem>>, vector<32x8xf32>
    %c0_23 = arith.constant 0 : index
    %c0_24 = arith.constant 0 : index
    %32 = vector.load %arg9[%c0_23, %c0_24] : memref<1x8xf32, #tpu.memory_space<vmem>>, vector<1x8xf32>
    %cst_25 = arith.constant dense<0.000000e+00> : vector<8x8xf32>
    %33 = tpu.matmul %30, %31, %cst_25 {dimension_numbers = #tpu.dot_dimension_numbers<[1], [0], [0], [1], [0, 0, 1, 1], [], []>} : vector<8x32xf32>, vector<32x8xf32>, vector<8x8xf32> -> vector<8x8xf32>
    %34 = vector.broadcast %32 : vector<1x8xf32> to vector<8x8xf32>
    %35 = arith.addf %33, %34 : vector<8x8xf32>
    %c0_26 = arith.constant 0 : index
    %c0_27 = arith.constant 0 : index
    %36 = vector.load %arg10[%c0_26, %c0_27] : memref<8x8xf32, #tpu.memory_space<vmem>>, vector<8x8xf32>
    tpu.vector_store %arg10[%c0_26, %c0_27], %35 {strides = array<i32>} : memref<8x8xf32, #tpu.memory_space<vmem>>, vector<8x8xf32>,
    return
  }
  func.func @transform_0(%arg0: i32) -> (i32, i32) {
    %c0_i32 = arith.constant 0 : i32
    %c0_i32_0 = arith.constant 0 : i32
    return %arg0, %c0_i32 : i32, i32
  }
  func.func @transform_1(%arg0: i32) -> (i32, i32) {
    %c0_i32 = arith.constant 0 : i32
    %c0_i32_0 = arith.constant 0 : i32
    %c0_i32_1 = arith.constant 0 : i32
    return %c0_i32, %c0_i32_0 : i32, i32
  }
  func.func @transform_2(%arg0: i32) -> (i32, i32) {
    %c0_i32 = arith.constant 0 : i32
    %c0_i32_0 = arith.constant 0 : i32
    %c0_i32_1 = arith.constant 0 : i32
    return %c0_i32, %c0_i32_0 : i32, i32
  }
  func.func @transform_3(%arg0: i32) -> (i32, i32) {
    %c0_i32 = arith.constant 0 : i32
    %c0_i32_0 = arith.constant 0 : i32
    %c0_i32_1 = arith.constant 0 : i32
    return %c0_i32, %c0_i32_0 : i32, i32
  }
  func.func @transform_4(%arg0: i32) -> (i32, i32) {
    %c0_i32 = arith.constant 0 : i32
    %c0_i32_0 = arith.constant 0 : i32
    %c0_i32_1 = arith.constant 0 : i32
    return %c0_i32, %c0_i32_0 : i32, i32
  }
  func.func @transform_5(%arg0: i32) -> (i32, i32) {
    %c0_i32 = arith.constant 0 : i32
    %c0_i32_0 = arith.constant 0 : i32
    %c0_i32_1 = arith.constant 0 : i32
    return %c0_i32, %c0_i32_0 : i32, i32
  }
  func.func @transform_6(%arg0: i32) -> (i32, i32) {
    %c0_i32 = arith.constant 0 : i32
    %c0_i32_0 = arith.constant 0 : i32
    %c0_i32_1 = arith.constant 0 : i32
    return %c0_i32, %c0_i32_0 : i32, i32
  }
  func.func @transform_7(%arg0: i32) -> (i32, i32) {
    %c0_i32 = arith.constant 0 : i32
    %c0_i32_0 = arith.constant 0 : i32
    %c0_i32_1 = arith.constant 0 : i32
    return %c0_i32, %c0_i32_0 : i32, i32
  }
  func.func @transform_8(%arg0: i32) -> (i32, i32) {
    %c0_i32 = arith.constant 0 : i32
    %c0_i32_0 = arith.constant 0 : i32
    %c0_i32_1 = arith.constant 0 : i32
    return %c0_i32, %c0_i32_0 : i32, i32
  }
  func.func @transform_9(%arg0: i32) -> (i32, i32) {
    %c0_i32 = arith.constant 0 : i32
    %c0_i32_0 = arith.constant 0 : i32
    return %arg0, %c0_i32 : i32, i32
  }
}

</mosaic_0001>

<llo_original>
// kernel: tpu_custom_call.1
$region0: #{tpu_custom_call.1}
  #allocation0 [shape = 'u32[]', space=smem, size = 0x4, offset = 0x4, fixed_abs, tag = 'smem constant byte address 0x4 - core index']
  #allocation1 [shape = 'u32[72,128]{1,0:T(1,128)}', space=vmem, size = 0x9000, scoped, tag = 'internal scratch']
  %s0 = inlined_call_operand.vmem [shape: f32[8,16], index: 0, kind: input, shape index: {}]
  %s1 = inlined_call_operand.hbm [shape: f32[16,32], index: 1, kind: input, shape index: {}]
  %s2 = inlined_call_operand.vmem [shape: f32[1,32], index: 2, kind: input, shape index: {}]
  %s3 = inlined_call_operand.vmem [shape: f32[32,32], index: 3, kind: input, shape index: {}]
  %s4 = inlined_call_operand.vmem [shape: f32[1,32], index: 4, kind: input, shape index: {}]
  %s5 = inlined_call_operand.hbm [shape: f32[32,32], index: 5, kind: input, shape index: {}]
  %s6 = inlined_call_operand.vmem [shape: f32[1,32], index: 6, kind: input, shape index: {}]
  %s7 = inlined_call_operand.vmem [shape: f32[32,8], index: 7, kind: input, shape index: {}]
  %s8 = inlined_call_operand.vmem [shape: f32[1,8], index: 8, kind: input, shape index: {}]
  %s9 = inlined_call_operand.hbm [shape: f32[8,8], index: 9, kind: output, shape index: {}]
  %s10 = sld [smem:[#allocation0]]
  $region54: #{tpu_custom_call.1} parent=0
    _
  %s12 = ssub.s32 1, %s10
  %s13 = scalar_select 0, %s12, %s10
  $region1: #{tpu_custom_call.1} parent=0
    #allocation2 [shape = 'u8[8192]{0}', space=vmem, size = 0x2000, scoped, tag = 'input window, operand 1, single buffered']
    #allocation3 [shape = 's32[1]{0}', space=sflag, size = 0x4, scoped, tag = 'scoped memory for tpu_custom_call.1']
    #allocation4 [shape = 's32[1]{0}', space=sflag, size = 0x4, scoped, tag = 'scoped memory for tpu_custom_call.1']
    #allocation5 [shape = 'u8[16384]{0}', space=vmem, size = 0x4000, scoped, tag = 'input window, operand 5, single buffered']
    #allocation6 [shape = 's32[1]{0}', space=sflag, size = 0x4, scoped, tag = 'scoped memory for tpu_custom_call.1']
    #allocation7 [shape = 'u8[4096]{0}', space=vmem, size = 0x1000, scoped, tag = 'output window, operand 0, single buffered']
    %14 = vsyncpa [#allocation3], 0
    %15 = vsyncpa [#allocation6], 0
    %16 = vsyncpa [#allocation4], 0
    // Predicated region
    $region2: #{tpu_custom_call.1} parent=1 // pred_check
      _
    $region3: #{tpu_custom_call.1} parent=1 // pred_check_branch
      %18 = sbr.rel (0) target = $region5
    $region4: #{tpu_custom_call.1} parent=1 // pred_region
      _
    $region5: #{tpu_custom_call.1} parent=1 // pred_fallthru
      _
    // Predicated region
    $region6: #{tpu_custom_call.1} parent=1 // pred_check
      _
    $region7: #{tpu_custom_call.1} parent=1 // pred_check_branch
      %20 = sbr.rel (0) target = $region9
    $region8: #{tpu_custom_call.1} parent=1 // pred_region
      %22 = vsyncadd [#allocation3], 0
      %s23 = sshll.u32 %s1, 4
      %s24 = int_to_ptr.hbm [resolvable:$true] %s23
      %s25 = sshll.u32 [#allocation2], 4
      %s26 = int_to_ptr.vmem [resolvable:$true] %s25
      %31 = dma.hbm_to_vmem [thread:$0]  %s24, 256, %s26, [#allocation3], 128, 128, 8
    $region9: #{tpu_custom_call.1} parent=1 // pred_fallthru
      _
    // Predicated region
    $region10: #{tpu_custom_call.1} parent=1 // pred_check
      _
    $region11: #{tpu_custom_call.1} parent=1 // pred_check_branch
      %33 = sbr.rel (0) target = $region13
    $region12: #{tpu_custom_call.1} parent=1 // pred_region
      _
    $region13: #{tpu_custom_call.1} parent=1 // pred_fallthru
      _
    // Predicated region
    $region14: #{tpu_custom_call.1} parent=1 // pred_check
      _
    $region15: #{tpu_custom_call.1} parent=1 // pred_check_branch
      %35 = sbr.rel (0) target = $region17
    $region16: #{tpu_custom_call.1} parent=1 // pred_region
      _
    $region17: #{tpu_custom_call.1} parent=1 // pred_fallthru
      _
    // Predicated region
    $region18: #{tpu_custom_call.1} parent=1 // pred_check
      _
    $region19: #{tpu_custom_call.1} parent=1 // pred_check_branch
      %37 = sbr.rel (0) target = $region21
    $region20: #{tpu_custom_call.1} parent=1 // pred_region
      _
    $region21: #{tpu_custom_call.1} parent=1 // pred_fallthru
      _
    // Predicated region
    $region22: #{tpu_custom_call.1} parent=1 // pred_check
      _
    $region23: #{tpu_custom_call.1} parent=1 // pred_check_branch
      %39 = sbr.rel (0) target = $region25
    $region24: #{tpu_custom_call.1} parent=1 // pred_region
      %41 = vsyncadd [#allocation6], 0
      %s42 = sshll.u32 %s5, 4
      %s43 = int_to_ptr.hbm [resolvable:$true] %s42
      %s44 = sshll.u32 [#allocation5], 4
      %s45 = int_to_ptr.vmem [resolvable:$true] %s44
      %50 = dma.hbm_to_vmem [thread:$0]  %s43, 512, %s45, [#allocation6], 128, 128, 8
    $region25: #{tpu_custom_call.1} parent=1 // pred_fallthru
      _
    // Predicated region
    $region26: #{tpu_custom_call.1} parent=1 // pred_check
      _
    $region27: #{tpu_custom_call.1} parent=1 // pred_check_branch
      %52 = sbr.rel (0) target = $region29
    $region28: #{tpu_custom_call.1} parent=1 // pred_region
      _
    $region29: #{tpu_custom_call.1} parent=1 // pred_fallthru
      _
    // Predicated region
    $region30: #{tpu_custom_call.1} parent=1 // pred_check
      _
    $region31: #{tpu_custom_call.1} parent=1 // pred_check_branch
      %54 = sbr.rel (0) target = $region33
    $region32: #{tpu_custom_call.1} parent=1 // pred_region
      _
    $region33: #{tpu_custom_call.1} parent=1 // pred_fallthru
      _
    // Predicated region
    $region34: #{tpu_custom_call.1} parent=1 // pred_check
      _
    $region35: #{tpu_custom_call.1} parent=1 // pred_check_branch
      %56 = sbr.rel (0) target = $region37
    $region36: #{tpu_custom_call.1} parent=1 // pred_region
      _
    $region37: #{tpu_custom_call.1} parent=1 // pred_fallthru
      _
    // Predicated region
    $region38: #{tpu_custom_call.1} parent=1 // pred_check
      _
    $region39: #{tpu_custom_call.1} parent=1 // pred_check_branch
      %58 = sbr.rel (0) target = $region41
    $region40: #{tpu_custom_call.1} parent=1 // pred_region
      %60 = dma.done [#allocation3], 256
    $region41: #{tpu_custom_call.1} parent=1 // pred_fallthru
      _
    // Predicated region
    $region42: #{tpu_custom_call.1} parent=1 // pred_check
      _
    $region43: #{tpu_custom_call.1} parent=1 // pred_check_branch
      %62 = sbr.rel (0) target = $region45
    $region44: #{tpu_custom_call.1} parent=1 // pred_region
      %64 = dma.done [#allocation6], 512
    $region45: #{tpu_custom_call.1} parent=1 // pred_fallthru
      _
    %v65 = vld [vmem:[%s0] sm:$0xff]
    %v66 = vld [vmem:[#allocation2] sm:$0xff]
    %v67 = vld [vmem:[#allocation2 + $0x8] sm:$0xff]
    %v68 = vld [vmem:[%s2] sm:$0x1]
    %v70 = vperm.slane %v68, 0
    %vm72 = vcmask 130048
    %v74 = vsel %vm72, %v65, 0
    %76 = vmatpush.msra.mxu0 0.0
    %77 = vmatpush.msra.mxu0 0.0
    %78 = vmatpush.msra.mxu0 0.0
    %79 = vmatpush.msra.mxu0 0.0
    %80 = vmatpush.msra.mxu0 0.0
    %81 = vmatpush.msra.mxu0 0.0
    %82 = vmatpush.msra.mxu0 0.0
    %83 = vmatpush.msra.mxu0 0.0
    %84 = vmatpush.msra.mxu0 0.0
    %85 = vmatpush.msra.mxu0 0.0
    %86 = vmatpush.msra.mxu0 0.0
    %87 = vmatpush.msra.mxu0 0.0
    %88 = vmatpush.msra.mxu0 0.0
    %89 = vmatpush.msra.mxu0 0.0
    %90 = vmatpush.msra.mxu0 %v67
    %91 = vmatpush.msra.mxu0 %v66
    %92 = vmatmul.f32.gmra.mxu0 %v74
    %v93 = vpop.f32.mrf.mxu0
    %v94 = vadd.f32 %v70, %v93
    %95 = vdwg.mxu0
    %vm96 = vcmp.ge.f32.partialorder %v94, 0.0
    %v97 = vmul.f32 %v94, 0.01
    %v98 = vsel %vm96, %v94, %v97
    %v99 = vld [vmem:[%s3] sm:$0xff]
    %v100 = vld [vmem:[%s3 + $0x8] sm:$0xff]
    %v101 = vld [vmem:[%s3 + $0x10] sm:$0xff]
    %v102 = vld [vmem:[%s3 + $0x18] sm:$0xff]
    %v103 = vld [vmem:[%s4] sm:$0x1]
    %v105 = vperm.slane %v103, 0
    %vm107 = vcmask 261120
    %v109 = vsel %vm107, %v98, 0
    %111 = vmatpush.msra.mxu0 0.0
    %112 = vmatpush.msra.mxu0 0.0
    %113 = vmatpush.msra.mxu0 0.0
    %114 = vmatpush.msra.mxu0 0.0
    %115 = vmatpush.msra.mxu0 0.0
    %116 = vmatpush.msra.mxu0 0.0
    %117 = vmatpush.msra.mxu0 0.0
    %118 = vmatpush.msra.mxu0 0.0
    %119 = vmatpush.msra.mxu0 0.0
    %120 = vmatpush.msra.mxu0 0.0
    %121 = vmatpush.msra.mxu0 0.0
    %122 = vmatpush.msra.mxu0 0.0
    %123 = vmatpush.msra.mxu0 %v102
    %124 = vmatpush.msra.mxu0 %v101
    %125 = vmatpush.msra.mxu0 %v100
    %126 = vmatpush.msra.mxu0 %v99
    %127 = vmatmul.f32.gmra.mxu0 %v109
    %v128 = vpop.f32.mrf.mxu0
    %v129 = vadd.f32 %v105, %v128
    %130 = vdwg.mxu0
    %vm131 = vcmp.ge.f32.partialorder %v129, 0.0
    %v132 = vmul.f32 %v129, 0.01
    %v133 = vsel %vm131, %v129, %v132
    %v134 = vld [vmem:[#allocation5] sm:$0xff]
    %v135 = vld [vmem:[#allocation5 + $0x8] sm:$0xff]
    %v136 = vld [vmem:[#allocation5 + $0x10] sm:$0xff]
    %v137 = vld [vmem:[#allocation5 + $0x18] sm:$0xff]
    %v138 = vld [vmem:[%s6] sm:$0x1]
    %v140 = vperm.slane %v138, 0
    %v143 = vsel %vm107, %v133, 0
    %145 = vmatpush.msra.mxu0 0.0
    %146 = vmatpush.msra.mxu0 0.0
    %147 = vmatpush.msra.mxu0 0.0
    %148 = vmatpush.msra.mxu0 0.0
    %149 = vmatpush.msra.mxu0 0.0
    %150 = vmatpush.msra.mxu0 0.0
    %151 = vmatpush.msra.mxu0 0.0
    %152 = vmatpush.msra.mxu0 0.0
    %153 = vmatpush.msra.mxu0 0.0
    %154 = vmatpush.msra.mxu0 0.0
    %155 = vmatpush.msra.mxu0 0.0
    %156 = vmatpush.msra.mxu0 0.0
    %157 = vmatpush.msra.mxu0 %v137
    %158 = vmatpush.msra.mxu0 %v136
    %159 = vmatpush.msra.mxu0 %v135
    %160 = vmatpush.msra.mxu0 %v134
    %161 = vmatmul.f32.gmra.mxu0 %v143
    %v162 = vpop.f32.mrf.mxu0
    %v163 = vadd.f32 %v140, %v162
    %164 = vdwg.mxu0
    %vm165 = vcmp.ge.f32.partialorder %v163, 0.0
    %v166 = vmul.f32 %v163, 0.01
    %v167 = vsel %vm165, %v163, %v166
    %v168 = vld [vmem:[%s7] sm:$0xff]
    %v169 = vld [vmem:[%s7 + $0x8] sm:$0xff]
    %v170 = vld [vmem:[%s7 + $0x10] sm:$0xff]
    %v171 = vld [vmem:[%s7 + $0x18] sm:$0xff]
    %v172 = vld [vmem:[%s8] sm:$0x1]
    %v174 = vperm.slane %v172, 0
    %v177 = vsel %vm107, %v167, 0
    %179 = vmatpush.msra.mxu0 0.0
    %180 = vmatpush.msra.mxu0 0.0
    %181 = vmatpush.msra.mxu0 0.0
    %182 = vmatpush.msra.mxu0 0.0
    %183 = vmatpush.msra.mxu0 0.0
    %184 = vmatpush.msra.mxu0 0.0
    %185 = vmatpush.msra.mxu0 0.0
    %186 = vmatpush.msra.mxu0 0.0
    %187 = vmatpush.msra.mxu0 0.0
    %188 = vmatpush.msra.mxu0 0.0
    %189 = vmatpush.msra.mxu0 0.0
    %190 = vmatpush.msra.mxu0 0.0
    %191 = vmatpush.msra.mxu0 %v171
    %192 = vmatpush.msra.mxu0 %v170
    %193 = vmatpush.msra.mxu0 %v169
    %194 = vmatpush.msra.mxu0 %v168
    %195 = vmatmul.f32.gmra.mxu0 %v177
    %v196 = vpop.f32.mrf.mxu0
    %v197 = vadd.f32 %v174, %v196
    %198 = vdwg.mxu0
    %vm199 = vcmask 64512
    %200 = vst.msk [vmem:[#allocation7] sm:$0xff] %vm199, %v197
    // Predicated region
    $region46: #{tpu_custom_call.1} parent=1 // pred_check
      _
    $region47: #{tpu_custom_call.1} parent=1 // pred_check_branch
      %202 = sbr.rel (0) target = $region49
    $region48: #{tpu_custom_call.1} parent=1 // pred_region
      %204 = vsyncadd [#allocation4], 0
      %s206 = sshll.u32 [#allocation7], 4
      %s207 = int_to_ptr.vmem [resolvable:$true] %s206
      %s208 = sshll.u32 %s9, 4
      %s209 = int_to_ptr.hbm [resolvable:$true] %s208
      %211 = dma.vmem_to_hbm [thread:$0]  %s207, 128, %s209, [#allocation4]
    $region49: #{tpu_custom_call.1} parent=1 // pred_fallthru
      _
    // Predicated region
    $region50: #{tpu_custom_call.1} parent=1 // pred_check
      _
    $region51: #{tpu_custom_call.1} parent=1 // pred_check_branch
      %213 = sbr.rel (0) target = $region53
    $region52: #{tpu_custom_call.1} parent=1 // pred_region
      %215 = dma.done [#allocation4], 128
    $region53: #{tpu_custom_call.1} parent=1 // pred_fallthru
      _
    %216 = vsyncpa [#allocation3], 1
    %217 = vsyncpa [#allocation6], 1
    %218 = vsyncpa [#allocation4], 1

</llo_original>
